<compile_context>
chip_gen: v5e
topology: v5e:2x2
jax: 0.10.0
libtpu: 0.0.40
codegen_flags: <defaults>
</compile_context>

<pallas_src>
import functools
import math

import jax
import jax.numpy as jnp
from jax.experimental import pallas as pl
from jax.experimental.pallas import tpu as pltpu


def head_attention_kernel(x_ref, w_qkv_ref, o_ref, *, head_size, scale):
    # x_ref:     (BB, T, C)   block of batch elements
    # w_qkv_ref: (C, 3H)      fused [q | k | v] projection weights
    # o_ref:     (BB, T, H)
    x = x_ref[...]            # keep native dtype; MXU accumulates in f32 below
    w = w_qkv_ref[...]

    # Fused QKV projection: one MXU weight push / drain instead of three.
    qkv = jnp.einsum("btc,ch->bth", x, w,
                     preferred_element_type=jnp.float32)        # (BB, T, 3H)
    H = head_size
    # Fold the sqrt(H) score scale into q (T*H multiplies instead of T*T).
    q = qkv[:, :, :H] * scale
    k = qkv[:, :, H:2 * H]
    v = qkv[:, :, 2 * H:3 * H]

    # Scores: contract the last axes directly (no k.T / XLU transpose).
    wei = jnp.einsum("bth,bsh->bts", q, k,
                     preferred_element_type=jnp.float32)        # (BB, T, T)

    # Causal mask (computed once per invocation).  Large finite negative keeps
    # exp() at exactly 0 here and avoids NaN if a fully-masked row ever occurs.
    T = q.shape[1]
    row = jax.lax.broadcasted_iota(jnp.int32, (T, T), 0)
    col = jax.lax.broadcasted_iota(jnp.int32, (T, T), 1)
    wei = jnp.where((col <= row)[None, :, :], wei, -1e30)

    # Numerically-stable softmax (f32 on the VPU/EUP; correct choice on v5e too).
    wei_max = jnp.max(wei, axis=-1, keepdims=True)
    wei_exp = jnp.exp(wei - wei_max)
    denom = jnp.sum(wei_exp, axis=-1, keepdims=True)
    attn = wei_exp * pl.reciprocal(denom, approx=True)   # divide -> EUP slot

    # dropout: identity (eval mode)

    out = jnp.einsum("bts,bsh->bth", attn.astype(v.dtype), v,
                     preferred_element_type=jnp.float32)        # (BB, T, H)
    o_ref[...] = out.astype(o_ref.dtype)


def head_attention(x, wq, wk, wv):
    """x: (B, T, C); wq/wk/wv: (C, H) -> out: (B, T, H)."""
    B, T, C = x.shape
    H = wq.shape[1]

    # Fuse the three projection weights into one (C, 3H) operand.
    w_qkv = jnp.concatenate([wq, wk, wv], axis=1)

    # Split the batch into at most 2 independent ("parallel") blocks: on v7x
    # both TensorCores get work; on v5e/v6e it is at most one extra ~0.35 us
    # grid step instead of a B-long sequential grid.
    nb = 2 if (B % 2 == 0 and B >= 2) else 1
    bb = B // nb

    # NOTE: the reference module multiplies scores by sqrt(head_size); kept verbatim.
    scale = float(H) ** 0.5

    kernel = functools.partial(head_attention_kernel, head_size=H, scale=scale)
    return pl.pallas_call(
        kernel,
        out_shape=jax.ShapeDtypeStruct((B, T, H), x.dtype),
        grid_spec=pltpu.PrefetchScalarGridSpec(
            num_scalar_prefetch=0,
            grid=(nb,),
            in_specs=[
                pl.BlockSpec((bb, T, C), lambda b: (b, 0, 0)),
                pl.BlockSpec((C, 3 * H), lambda b: (0, 0)),
            ],
            out_specs=pl.BlockSpec((bb, T, H), lambda b: (b, 0, 0)),
        ),
        compiler_params=pltpu.CompilerParams(
            dimension_semantics=("parallel",)),
    )(x, w_qkv)


def reference(x, wq, wk, wv):
    """Pure-JAX reference matching the PyTorch forward."""
    k = x @ wk
    q = x @ wq
    v = x @ wv
    H = k.shape[-1]
    wei = (q @ jnp.swapaxes(k, -2, -1)) * (H ** 0.5)
    T = x.shape[1]
    tril = jnp.tril(jnp.ones((T, T), dtype=bool))
    wei = jnp.where(tril, wei, -jnp.inf)
    wei = jax.nn.softmax(wei, axis=-1)
    return wei @ v


if __name__ == "__main__":
    # Module hyperparameters (small, consistent with the module's forward)
    n_emb = 32       # C
    head_size = 16   # H
    block_size = 8   # max T (tril size)
    B, T = 2, block_size

    key = jax.random.PRNGKey(0)
    kx, kk, kq, kv = jax.random.split(key, 4)

    x = jax.random.normal(kx, (B, T, n_emb), dtype=jnp.float32)
    # nn.Linear(n_emb, head_size, bias=False) weights, pre-transposed to (C, H)
    scale = 1.0 / math.sqrt(n_emb)
    wk = jax.random.uniform(kk, (n_emb, head_size), minval=-scale, maxval=scale,
                            dtype=jnp.float32)
    wq = jax.random.uniform(kq, (n_emb, head_size), minval=-scale, maxval=scale,
                            dtype=jnp.float32)
    wv = jax.random.uniform(kv, (n_emb, head_size), minval=-scale, maxval=scale,
                            dtype=jnp.float32)

    out = head_attention(x, wq, wk, wv)
    out = jax.block_until_ready(out)

    ref = reference(x, wq, wk, wv)
    assert out.shape == (B, T, head_size)
    # Slightly relaxed tolerance: the softmax denominator uses the EUP
    # approximate reciprocal (pl.reciprocal(approx=True)).
    assert jnp.allclose(out, ref, atol=2e-3, rtol=2e-3), "mismatch vs reference"

    print("KERNEL_OK")
</pallas_src>

<mosaic_0001>
module attributes {stable_mosaic.version = 11 : i64} {
  func.func @head_attention_kernel(%arg0: i32, %arg1: memref<1x8x32xf32, #tpu.memory_space<vmem>>, %arg2: memref<32x48xf32, #tpu.memory_space<vmem>>, %arg3: memref<1x8x16xf32, #tpu.memory_space<vmem>>) attributes {dimension_semantics = [#tpu.dimension_semantics<parallel>], iteration_bounds = array<i64: 2>, scalar_prefetch = 0 : i64, scratch_operands = 0 : i64, tpu.core_type = #tpu.core_type<tc>, window_params = [{transform_indices = @transform_0, window_bounds = array<i64: 1, 8, 32>}, {pipeline_mode = #tpu.pipeline_mode<synchronous>, transform_indices = @transform_1, window_bounds = array<i64: 32, 48>}, {transform_indices = @transform_2, window_bounds = array<i64: 1, 8, 16>}]} {
    %c0 = arith.constant 0 : index
    %c0_0 = arith.constant 0 : index
    %c0_1 = arith.constant 0 : index
    %0 = vector.load %arg1[%c0, %c0_0, %c0_1] : memref<1x8x32xf32, #tpu.memory_space<vmem>>, vector<1x8x32xf32>
    %c0_2 = arith.constant 0 : index
    %c0_3 = arith.constant 0 : index
    %1 = vector.load %arg2[%c0_2, %c0_3] : memref<32x48xf32, #tpu.memory_space<vmem>>, vector<32x48xf32>
    "tpu.trace_start"() <{level = 10 : i32, message = "btc,ch->bth"}> : () -> ()
    %cst = arith.constant dense<0.000000e+00> : vector<1x8x48xf32>
    %2 = tpu.matmul %0, %1, %cst {dimension_numbers = #tpu.dot_dimension_numbers<[2], [0], [0, 1], [1], [0, 0, 0, 1, 1, 1], [], []>} : vector<1x8x32xf32>, vector<32x48xf32>, vector<1x8x48xf32> -> vector<1x8x48xf32>
    "tpu.trace_stop"() : () -> ()
    %3 = vector.extract_strided_slice %2 {offsets = [0, 0, 0], sizes = [1, 8, 16], strides = [1, 1, 1]} : vector<1x8x48xf32> to vector<1x8x16xf32>
    %cst_4 = arith.constant 4.000000e+00 : f32
    %4 = vector.broadcast %cst_4 : f32 to vector<1x8x16xf32>
    %5 = arith.mulf %3, %4 : vector<1x8x16xf32>
    %6 = vector.extract_strided_slice %2 {offsets = [0, 0, 16], sizes = [1, 8, 16], strides = [1, 1, 1]} : vector<1x8x48xf32> to vector<1x8x16xf32>
    %7 = vector.extract_strided_slice %2 {offsets = [0, 0, 32], sizes = [1, 8, 16], strides = [1, 1, 1]} : vector<1x8x48xf32> to vector<1x8x16xf32>
    "tpu.trace_start"() <{level = 10 : i32, message = "bth,bsh->bts"}> : () -> ()
    %cst_5 = arith.constant dense<0.000000e+00> : vector<1x8x8xf32>
    %8 = tpu.matmul %5, %6, %cst_5 {dimension_numbers = #tpu.dot_dimension_numbers<[2], [2], [1], [1], [0, 0, 0, 1, 1, 1], [0], [0]>} : vector<1x8x16xf32>, vector<1x8x16xf32>, vector<1x8x8xf32> -> vector<1x8x8xf32>
    "tpu.trace_stop"() : () -> ()
    %9 = tpu.iota {dimensions = array<i32: 0>} : vector<8x8xi32>
    %10 = tpu.iota {dimensions = array<i32: 1>} : vector<8x8xi32>
    %11 = arith.cmpi sle, %10, %9 : vector<8x8xi32>
    %12 = vector.shape_cast %11 : vector<8x8xi1> to vector<1x8x8xi1>
    %cst_6 = arith.constant -1.000000e+30 : f32
    %13 = vector.broadcast %cst_6 : f32 to vector<1x8x8xf32>
    %14 = arith.select %12, %8, %13 : vector<1x8x8xi1>, vector<1x8x8xf32>
    %cst_7 = arith.constant dense<0xFF800000> : vector<1x8xf32>
    %15 = vector.multi_reduction <maximumf>, %14, %cst_7 [2] : vector<1x8x8xf32> to vector<1x8xf32>
    %16 = vector.shape_cast %15 : vector<1x8xf32> to vector<1x8x1xf32>
    %17 = vector.broadcast %16 : vector<1x8x1xf32> to vector<1x8x8xf32>
    %18 = arith.subf %14, %17 : vector<1x8x8xf32>
    %19 = math.exp %18 : vector<1x8x8xf32>
    %cst_8 = arith.constant dense<0.000000e+00> : vector<1x8xf32>
    %20 = vector.multi_reduction <add>, %19, %cst_8 [2] : vector<1x8x8xf32> to vector<1x8xf32>
    %21 = vector.shape_cast %20 : vector<1x8xf32> to vector<1x8x1xf32>
    %22 = tpu.reciprocal %21 {approx = true} : vector<1x8x1xf32> -> vector<1x8x1xf32>
    %23 = vector.broadcast %22 : vector<1x8x1xf32> to vector<1x8x8xf32>
    %24 = arith.mulf %19, %23 : vector<1x8x8xf32>
    "tpu.trace_start"() <{level = 10 : i32, message = "bts,bsh->bth"}> : () -> ()
    %cst_9 = arith.constant dense<0.000000e+00> : vector<1x8x16xf32>
    %25 = tpu.matmul %24, %7, %cst_9 {dimension_numbers = #tpu.dot_dimension_numbers<[2], [1], [1], [2], [0, 0, 0, 1, 1, 2], [0], [0]>} : vector<1x8x8xf32>, vector<1x8x16xf32>, vector<1x8x16xf32> -> vector<1x8x16xf32>
    "tpu.trace_stop"() : () -> ()
    %c0_10 = arith.constant 0 : index
    %c0_11 = arith.constant 0 : index
    %c0_12 = arith.constant 0 : index
    %26 = vector.load %arg3[%c0_10, %c0_11, %c0_12] : memref<1x8x16xf32, #tpu.memory_space<vmem>>, vector<1x8x16xf32>
    tpu.vector_store %arg3[%c0_10, %c0_11, %c0_12], %25 {strides = array<i32>} : memref<1x8x16xf32, #tpu.memory_space<vmem>>, vector<1x8x16xf32>,
    return
  }
  func.func @transform_0(%arg0: i32) -> (i32, i32, i32) {
    %c0_i32 = arith.constant 0 : i32
    %c0_i32_0 = arith.constant 0 : i32
    %c0_i32_1 = arith.constant 0 : i32
    return %arg0, %c0_i32, %c0_i32_0 : i32, i32, i32
  }
  func.func @transform_1(%arg0: i32) -> (i32, i32) {
    %c0_i32 = arith.constant 0 : i32
    %c0_i32_0 = arith.constant 0 : i32
    %c0_i32_1 = arith.constant 0 : i32
    return %c0_i32, %c0_i32_0 : i32, i32
  }
  func.func @transform_2(%arg0: i32) -> (i32, i32, i32) {
    %c0_i32 = arith.constant 0 : i32
    %c0_i32_0 = arith.constant 0 : i32
    %c0_i32_1 = arith.constant 0 : i32
    return %arg0, %c0_i32, %c0_i32_0 : i32, i32, i32
  }
}

</mosaic_0001>

<llo_original>
// kernel: tpu_custom_call.1
$region0: #{tpu_custom_call.1}
  #allocation0 [shape = 'u32[]', space=smem, size = 0x4, offset = 0x4, fixed_abs, tag = 'smem constant byte address 0x4 - core index']
  #allocation1 [shape = 'u32[72,128]{1,0:T(1,128)}', space=vmem, size = 0x9000, scoped, tag = 'internal scratch']
  %s0 = inlined_call_operand.hbm [shape: f32[2,8,32], index: 0, kind: input, shape index: {}]
  %s1 = inlined_call_operand.hbm [shape: f32[32,48], index: 1, kind: input, shape index: {}]
  %s2 = inlined_call_operand.hbm [shape: f32[2,8,16], index: 2, kind: output, shape index: {}]
  %s3 = sld [smem:[#allocation0]]
  $region49: #{tpu_custom_call.1} parent=0
    _
  %s5 = ssub.s32 1, %s3
  %s6 = scalar_select 0, %s5, %s3
  $region1: #{tpu_custom_call.1} parent=0
    #allocation2 [shape = 'u8[8192]{0}', space=vmem, size = 0x2000, scoped, tag = 'input window, operand 0']
    #allocation3 [shape = 's32[2]{0}', space=sflag, size = 0x8, scoped, tag = 'scoped memory for tpu_custom_call.1']
    #allocation4 [shape = 's32[2]{0}', space=sflag, size = 0x8, scoped, tag = 'scoped memory for tpu_custom_call.1']
    #allocation5 [shape = 'u8[16384]{0}', space=vmem, size = 0x4000, scoped, tag = 'input window, operand 1, single buffered']
    #allocation6 [shape = 's32[1]{0}', space=sflag, size = 0x4, scoped, tag = 'scoped memory for tpu_custom_call.1']
    #allocation7 [shape = 'u8[8192]{0}', space=vmem, size = 0x2000, scoped, tag = 'output window, operand 0']
    %7 = vsyncpa [#allocation3], 0
    %s8 = scalar_lea.sflag [#allocation3], 1
    %9 = vsyncpa %s8, 0
    %10 = vsyncpa [#allocation6], 0
    %11 = vsyncpa [#allocation4], 0
    %s12 = scalar_lea.sflag [#allocation4], 1
    %13 = vsyncpa %s12, 0
    loop: start=0, step=1, limit=4
    $region2: #{tpu_custom_call.1} parent=1 // loop_pre_header
      _
    $region3: #{tpu_custom_call.1} parent=1 // loop_header
      %s15 = sphi 0, %s19
      %p16 = scmp.ge.s32.totalorder %s15, 4
      %s25 = sphi 0, %s27
      %s28 = sphi 0, %s25
      %s29 = sphi 0, %s28
      %s45 = sphi 0, %s29
      %s49 = sphi 0, %s49
      %s51 = sphi 0, %s49
      %s52 = sphi 0, %s51
      %s66 = sphi 0, %s52
      %s72 = sphi 0, %s74
      %s75 = sphi 0, %s72
      %s76 = sphi 0, %s75
      %s92 = sphi 0, %s76
    $region4: #{tpu_custom_call.1} parent=1 // loop_header_branch
      %18 = sbr.rel (%p16) target = $region8
    $region5: #{tpu_custom_call.1} parent=1 // loop_body
      %s20 = ssub.s32 %s15, 1
      %s21 = ssub.s32 %s15, 2
      %s22 = sadd.s32 %s15, 1
      %s23 = ssub.s32 %s15, %s22
      %p24 = scmp.eq.s32.totalorder %s23, 0
      %s26 = sadd.s32 %s25, 1
      %s27 = scalar_select %p24, %s25, %s26
      %p30 = pneg %p24
      %p31 = scmp.eq.s32.totalorder %s15, 1
      %p32 = por %p30, %p31
      %p33 = scmp.ne.s32.totalorder %s25, %s28
      %p34 = scmp.eq.s32.totalorder %s15, 0
      %p35 = por %p33, %p34
      %p36 = scmp.ne.s32.totalorder %s25, %s28
      %p37 = scmp.eq.s32.totalorder %s20, 1
      %p38 = por %p36, %p37
      %p39 = scmp.ne.s32.totalorder %s28, %s29
      %p40 = scmp.eq.s32.totalorder %s20, 0
      %p41 = por %p39, %p40
      %p42 = scmp.ne.s32.totalorder %s28, %s29
      %p43 = scmp.eq.s32.totalorder %s21, 1
      %p44 = por %p42, %p43
      %p46 = scmp.ne.s32.totalorder %s29, %s45
      %p47 = scmp.eq.s32.totalorder %s21, 0
      %p48 = por %p46, %p47
      %s50 = sadd.s32 %s49, 1
      %p53 = scmp.eq.s32.totalorder %s15, 1
      %p54 = scmp.ne.s32.totalorder %s49, %s51
      %p55 = scmp.eq.s32.totalorder %s15, 0
      %p56 = por %p54, %p55
      %p57 = scmp.ne.s32.totalorder %s49, %s51
      %p58 = scmp.eq.s32.totalorder %s20, 1
      %p59 = por %p57, %p58
      %p60 = scmp.ne.s32.totalorder %s51, %s52
      %p61 = scmp.eq.s32.totalorder %s20, 0
      %p62 = por %p60, %p61
      %p63 = scmp.ne.s32.totalorder %s51, %s52
      %p64 = scmp.eq.s32.totalorder %s21, 1
      %p65 = por %p63, %p64
      %p67 = scmp.ne.s32.totalorder %s52, %s66
      %p68 = scmp.eq.s32.totalorder %s21, 0
      %p69 = por %p67, %p68
      %s70 = ssub.s32 %s15, %s22
      %p71 = scmp.eq.s32.totalorder %s70, 0
      %s73 = sadd.s32 %s72, 1
      %s74 = scalar_select %p71, %s72, %s73
      %p77 = pneg %p71
      %p78 = scmp.eq.s32.totalorder %s15, 1
      %p79 = por %p77, %p78
      %p80 = scmp.ne.s32.totalorder %s72, %s75
      %p81 = scmp.eq.s32.totalorder %s15, 0
      %p82 = por %p80, %p81
      %p83 = scmp.ne.s32.totalorder %s72, %s75
      %p84 = scmp.eq.s32.totalorder %s20, 1
      %p85 = por %p83, %p84
      %p86 = scmp.ne.s32.totalorder %s75, %s76
      %p87 = scmp.eq.s32.totalorder %s20, 0
      %p88 = por %p86, %p87
      %p89 = scmp.ne.s32.totalorder %s75, %s76
      %p90 = scmp.eq.s32.totalorder %s21, 1
      %p91 = por %p89, %p90
      %p93 = scmp.ne.s32.totalorder %s76, %s92
      %p94 = scmp.eq.s32.totalorder %s21, 0
      %p95 = por %p93, %p94
      %p96 = scmp.le.s32.totalorder 1, %s15
      %p97 = scmp.lt.s32.totalorder %s15, 3
      %p98 = pnand %p96, %p97
      %p99 = pneg %p98
      // Predicated region
      $region9: #{tpu_custom_call.1} parent=5 // pred_check
        _
      $region10: #{tpu_custom_call.1} parent=5 // pred_check_branch
        %101 = sbr.rel (%p98) target = $region12
      $region11: #{tpu_custom_call.1} parent=5 // pred_region
        %s102 = ssub.s32 %s15, 1
        // Predicated region
        $region13: #{tpu_custom_call.1} parent=11 // pred_check
          %p103 = pneg %p62
        $region14: #{tpu_custom_call.1} parent=11 // pred_check_branch
          %105 = sbr.rel (%p103) target = $region16
        $region15: #{tpu_custom_call.1} parent=11 // pred_region
          %107 = vsyncadd [#allocation6], 0
          %s108 = sshll.u32 %s1, 4
          %s109 = int_to_ptr.hbm [resolvable:$true] %s108
          %s110 = sshll.u32 [#allocation5], 4
          %s111 = int_to_ptr.vmem [resolvable:$true] %s110
          %116 = dma.hbm_to_vmem [thread:$0]  %s109, 512, %s111, [#allocation6], 128, 128, 8
        $region16: #{tpu_custom_call.1} parent=11 // pred_fallthru
          _
      $region12: #{tpu_custom_call.1} parent=5 // pred_fallthru
        _
      %p117 = scmp.lt.s32.totalorder %s15, 2
      // Predicated region
      $region17: #{tpu_custom_call.1} parent=5 // pred_check
        %p118 = pneg %p117
      $region18: #{tpu_custom_call.1} parent=5 // pred_check_branch
        %120 = sbr.rel (%p118) target = $region20
      $region19: #{tpu_custom_call.1} parent=5 // pred_region
        // Predicated region
        $region21: #{tpu_custom_call.1} parent=19 // pred_check
          %p121 = pneg %p35
        $region22: #{tpu_custom_call.1} parent=19 // pred_check_branch
          %123 = sbr.rel (%p121) target = $region24
        $region23: #{tpu_custom_call.1} parent=19 // pred_region
          %s124 = sand.u32 %s25, 1
          %s125 = scalar_lea.sflag [#allocation3], %s124
          %s126 = sand.u32 %s25, 1
          %s127 = smul.addr %s126, 8
          %s128 = scalar_lea.vmem [#allocation2], %s127
          %130 = vsyncadd %s125, 0
          %s131 = smul.addr %s15, 8
          %s132 = scalar_lea.hbm %s0, %s131
          %s134 = sshll.u32 %s132, 4
          %s135 = int_to_ptr.hbm [resolvable:$true] %s134
          %s136 = sshll.u32 %s128, 4
          %s137 = int_to_ptr.vmem [resolvable:$true] %s136
          %139 = dma.hbm_to_vmem [thread:$0]  %s135, 128, %s137, %s125
        $region24: #{tpu_custom_call.1} parent=19 // pred_fallthru
          _
      $region20: #{tpu_custom_call.1} parent=5 // pred_fallthru
        _
      %p140 = scmp.le.s32.totalorder 1, %s15
      %p141 = scmp.lt.s32.totalorder %s15, 3
      %p142 = pnand %p140, %p141
      %p143 = pneg %p142
      // Predicated region
      $region25: #{tpu_custom_call.1} parent=5 // pred_check
        _
      $region26: #{tpu_custom_call.1} parent=5 // pred_check_branch
        %145 = sbr.rel (%p142) target = $region28
      $region27: #{tpu_custom_call.1} parent=5 // pred_region
        %s146 = ssub.s32 %s15, 1
        %s147 = sand.u32 %s28, 1
        %s148 = scalar_lea.sflag [#allocation3], %s147
        %s149 = sand.u32 %s28, 1
        %s150 = smul.addr %s149, 8
        %s151 = scalar_lea.vmem [#allocation2], %s150
        // Predicated region
        $region29: #{tpu_custom_call.1} parent=27 // pred_check
          %p152 = pneg %p41
        $region30: #{tpu_custom_call.1} parent=27 // pred_check_branch
          %154 = sbr.rel (%p152) target = $region32
        $region31: #{tpu_custom_call.1} parent=27 // pred_region
          %156 = dma.done %s148, 128
        $region32: #{tpu_custom_call.1} parent=27 // pred_fallthru
          _
        // Predicated region
        $region33: #{tpu_custom_call.1} parent=27 // pred_check
          %p157 = pneg %p62
        $region34: #{tpu_custom_call.1} parent=27 // pred_check_branch
          %159 = sbr.rel (%p157) target = $region36
        $region35: #{tpu_custom_call.1} parent=27 // pred_region
          %161 = dma.done [#allocation6], 512
        $region36: #{tpu_custom_call.1} parent=27 // pred_fallthru
          _
        %s162 = sand.u32 %s28, 1
        %s163 = scalar_lea.sflag [#allocation3], %s162
        %s164 = sand.u32 %s28, 1
        %s165 = smul.addr %s164, 8
        %s166 = scalar_lea.vmem [#allocation2], %s165
        %p167 = pneg %p41
        %p168 = pneg %p38
        %p169 = pneg %p62
        %p170 = pneg %p59
        %p171 = pneg %p88
        %p172 = pneg %p85
        %s173 = sand.u32 %s75, 1
        %s174 = scalar_lea.sflag [#allocation4], %s173
        %s175 = sand.u32 %s75, 1
        %s176 = smul.addr %s175, 8
        %s177 = scalar_lea.vmem [#allocation7], %s176
        %v178 = vld [vmem:[%s151] sm:$0xff]
        %v179 = vld [vmem:[#allocation5] sm:$0xff]
        %v180 = vld [vmem:[#allocation5 + $0x8] sm:$0xff]
        %v181 = vld [vmem:[#allocation5 + $0x10] sm:$0xff]
        %v182 = vld [vmem:[#allocation5 + $0x18] sm:$0xff]
        %vm183 = vcmask 261120
        %v185 = vsel %vm183, %v178, 0
        %187 = vmatpush.msra.mxu0 0.0
        %188 = vmatpush.msra.mxu0 0.0
        %189 = vmatpush.msra.mxu0 0.0
        %190 = vmatpush.msra.mxu0 0.0
        %191 = vmatpush.msra.mxu0 0.0
        %192 = vmatpush.msra.mxu0 0.0
        %193 = vmatpush.msra.mxu0 0.0
        %194 = vmatpush.msra.mxu0 0.0
        %195 = vmatpush.msra.mxu0 0.0
        %196 = vmatpush.msra.mxu0 0.0
        %197 = vmatpush.msra.mxu0 0.0
        %198 = vmatpush.msra.mxu0 0.0
        %199 = vmatpush.msra.mxu0 %v182
        %200 = vmatpush.msra.mxu0 %v181
        %201 = vmatpush.msra.mxu0 %v180
        %202 = vmatpush.msra.mxu0 %v179
        %203 = vmatmul.f32.gmra.mxu0 %v185
        %v204 = vpop.f32.mrf.mxu0
        %v205 = vadd.f32 0.0, %v204
        %206 = vdwg.mxu0
        %v207 = vmul.f32 %v205, 4.0
        %209 = vrot.lane.b32.xlu0 %v205, 112
        %v210 = vpop.permute.xlu0 %209
        %vm211 = vcmask 130048
        %v213 = vsel %vm211, %v207, 0
        %v215 = vsel %vm211, %v210, 0
        %217 = vmatpush.xpose.msra.mxu0 0.0
        %218 = vmatpush.xpose.msra.mxu0 0.0
        %219 = vmatpush.xpose.msra.mxu0 0.0
        %220 = vmatpush.xpose.msra.mxu0 0.0
        %221 = vmatpush.xpose.msra.mxu0 0.0
        %222 = vmatpush.xpose.msra.mxu0 0.0
        %223 = vmatpush.xpose.msra.mxu0 0.0
        %224 = vmatpush.xpose.msra.mxu0 0.0
        %225 = vmatpush.xpose.msra.mxu0 0.0
        %226 = vmatpush.xpose.msra.mxu0 0.0
        %227 = vmatpush.xpose.msra.mxu0 0.0
        %228 = vmatpush.xpose.msra.mxu0 0.0
        %229 = vmatpush.xpose.msra.mxu0 0.0
        %230 = vmatpush.xpose.msra.mxu0 0.0
        %231 = vmatpush.xpose.msra.mxu0 0.0
        %232 = vmatpush.xpose.msra.mxu0 %v215
        %233 = vmatmul.f32.gmra.mxu0 %v213
        %v234 = vpop.f32.mrf.mxu0
        %v235 = vadd.f32 0.0, %v234
        %236 = vdwg.mxu0
        %v237 = vlaneseq
        %v238 = vshrl.u32 %v237, 7
        %v239 = vlaneseq
        %v240 = vand.u32 %v239, 127
        %vm241 = vcmp.le.s32.totalorder %v240, %v238
        %v242 = vsel %vm241, %v235, -1e+30
        %vm243 = vcmask 64512
        %v244 = vsel %vm243, %v242, -inf
        %245 = vmax.xlane.f32.xlu0 %v244
        %v246 = vpop.xlane.xlu0 %245
        %v247 = vsub.f32 %v242, %v246
        %v248 = vmul.f32 %v247, 1.442695
        %v249 = vpow.pop %v248
        %v250 = vsel %vm243, %v249, 0.0
        %251 = vadd.xlane.f32.xlu0 %v250
        %v252 = vpop.xlane.xlu0 %251
        %v253 = vrcp.pop %v252
        %v254 = vmul.f32 %v249, %v253
        %255 = vrot.lane.b32.xlu0 %v205, 96
        %v256 = vpop.permute.xlu0 %255
        %v259 = vsel %vm243, %v254, 0
        %261 = vmatpush.msra.mxu0 0.0
        %262 = vmatpush.msra.mxu0 0.0
        %263 = vmatpush.msra.mxu0 0.0
        %264 = vmatpush.msra.mxu0 0.0
        %265 = vmatpush.msra.mxu0 0.0
        %266 = vmatpush.msra.mxu0 0.0
        %267 = vmatpush.msra.mxu0 0.0
        %268 = vmatpush.msra.mxu0 0.0
        %269 = vmatpush.msra.mxu0 0.0
        %270 = vmatpush.msra.mxu0 0.0
        %271 = vmatpush.msra.mxu0 0.0
        %272 = vmatpush.msra.mxu0 0.0
        %273 = vmatpush.msra.mxu0 0.0
        %274 = vmatpush.msra.mxu0 0.0
        %275 = vmatpush.msra.mxu0 0.0
        %276 = vmatpush.msra.mxu0 %v256
        %277 = vmatmul.f32.gmra.mxu0 %v259
        %v278 = vpop.f32.mrf.mxu0
        %v279 = vadd.f32 0.0, %v278
        %280 = vdwg.mxu0
        %281 = vst.msk [vmem:[%s177] sm:$0xff] %vm211, %v279
        %s282 = sand.u32 %s75, 1
        %s283 = scalar_lea.sflag [#allocation4], %s282
        %s284 = sand.u32 %s75, 1
        %s285 = smul.addr %s284, 8
        %s286 = scalar_lea.vmem [#allocation7], %s285
        // Predicated region
        $region37: #{tpu_custom_call.1} parent=27 // pred_check
          %p287 = pneg %p85
        $region38: #{tpu_custom_call.1} parent=27 // pred_check_branch
          %289 = sbr.rel (%p287) target = $region40
        $region39: #{tpu_custom_call.1} parent=27 // pred_region
          %291 = vsyncadd %s283, 0
          %s292 = smul.addr %s20, 8
          %s293 = scalar_lea.hbm %s2, %s292
          %s295 = sshll.u32 %s286, 4
          %s296 = int_to_ptr.vmem [resolvable:$true] %s295
          %s297 = sshll.u32 %s293, 4
          %s298 = int_to_ptr.hbm [resolvable:$true] %s297
          %300 = dma.vmem_to_hbm [thread:$0]  %s296, 128, %s298, %s283
        $region40: #{tpu_custom_call.1} parent=27 // pred_fallthru
          _
      $region28: #{tpu_custom_call.1} parent=5 // pred_fallthru
        _
      %p301 = scmp.le.s32.totalorder 2, %s15
      // Predicated region
      $region41: #{tpu_custom_call.1} parent=5 // pred_check
        %p302 = pneg %p301
      $region42: #{tpu_custom_call.1} parent=5 // pred_check_branch
        %304 = sbr.rel (%p302) target = $region44
      $region43: #{tpu_custom_call.1} parent=5 // pred_region
        %s305 = ssub.s32 %s15, 2
        // Predicated region
        $region45: #{tpu_custom_call.1} parent=43 // pred_check
          %p306 = pneg %p91
        $region46: #{tpu_custom_call.1} parent=43 // pred_check_branch
          %308 = sbr.rel (%p306) target = $region48
        $region47: #{tpu_custom_call.1} parent=43 // pred_region
          %s309 = sand.u32 %s76, 1
          %s310 = scalar_lea.sflag [#allocation4], %s309
          %s311 = sand.u32 %s76, 1
          %s312 = smul.addr %s311, 8
          %s313 = scalar_lea.vmem [#allocation7], %s312
          %315 = dma.done %s310, 128
        $region48: #{tpu_custom_call.1} parent=43 // pred_fallthru
          _
      $region44: #{tpu_custom_call.1} parent=5 // pred_fallthru
        _
    $region6: #{tpu_custom_call.1} parent=1 // loop_footer
      %s19 = sadd.s32 1, %s15
    $region7: #{tpu_custom_call.1} parent=1 // loop_footer_branch
      %14 = sbr.rel target = $region3
    $region8: #{tpu_custom_call.1} parent=1 // loop_exit
      _
    %316 = vsyncpa [#allocation3], 1
    %s317 = scalar_lea.sflag [#allocation3], 1
    %318 = vsyncpa %s317, 1
    %319 = vsyncpa [#allocation6], 1
    %320 = vsyncpa [#allocation4], 1
    %s321 = scalar_lea.sflag [#allocation4], 1
    %322 = vsyncpa %s321, 1

</llo_original>
